<compile_context>
chip_gen: v7x
topology: tpu7x:2x2x1
jax: 0.10.0
libtpu: 0.0.40
codegen_flags: <defaults>
</compile_context>

<pallas_src>
from typing import Any, Dict

import jax
import jax.numpy as jnp
from jax.experimental import pallas as pl
from jax.experimental.pallas import tpu as pltpu

_CHUNK_THRESHOLD_BYTES = 8 << 20   # chunk the DMA only for arrays >= 8 MiB
_MAX_DMA_CHUNKS = 4


def _single_dma_kernel(x_ref, o_ref, sem):
    # One HBM->HBM DMA covering the whole array: no VMEM staging, no grid.
    cp = pltpu.make_async_copy(x_ref, o_ref, sem)
    cp.start()
    cp.wait()


def _make_chunked_dma_kernel(num_chunks: int, chunk_rows: int, rows: int):
    """HBM->HBM copy as `num_chunks` concurrent DMAs along the leading axis."""

    def kernel(x_ref, o_ref, sems):
        copies = []
        for c in range(num_chunks):           # static Python loop (trace time)
            start = c * chunk_rows
            size = min(chunk_rows, rows - start)
            cp = pltpu.make_async_copy(
                x_ref.at[pl.ds(start, size)],
                o_ref.at[pl.ds(start, size)],
                sems.at[c],
            )
            cp.start()
            copies.append(cp)
        for cp in copies:
            cp.wait()

    return kernel


@jax.jit
def _identity_pallas(x: jax.Array) -> jax.Array:
    """Identity pass-through of an arbitrarily-shaped array via a raw DMA."""
    n = int(x.size)
    if n == 0:
        return x

    nbytes = n * jnp.dtype(x.dtype).itemsize
    cost = pl.CostEstimate(flops=0, transcendentals=0, bytes_accessed=2 * nbytes)

    rows = x.shape[0] if x.ndim >= 1 else 0
    if nbytes >= _CHUNK_THRESHOLD_BYTES and rows >= 2:
        # Split along the leading axis into up to 4 overlapping DMAs.
        chunk_rows = pl.cdiv(rows, min(_MAX_DMA_CHUNKS, rows))
        num_chunks = pl.cdiv(rows, chunk_rows)
        kernel = _make_chunked_dma_kernel(num_chunks, chunk_rows, rows)
        scratch = [pltpu.SemaphoreType.DMA((num_chunks,))]
    else:
        kernel = _single_dma_kernel
        scratch = [pltpu.SemaphoreType.DMA(())]

    return pl.pallas_call(
        kernel,
        out_shape=jax.ShapeDtypeStruct(x.shape, x.dtype),
        in_specs=[pl.BlockSpec(memory_space=pl.ANY)],
        out_specs=pl.BlockSpec(memory_space=pl.ANY),
        scratch_shapes=scratch,
        cost_estimate=cost,
    )(x)


class ModelConfig:
    def __init__(self, input_key: str = "image"):
        self.input_key = input_key


class BaseModel:
    """JAX/Pallas mirror of stylerank's BaseModel."""

    def __init__(self, config: ModelConfig):
        self.config = config
        self.input_key = config.input_key

    def forward(self, batch: Dict[str, Any], *args, **kwargs):
        # Base-class semantics: select batch[input_key]; no transformation is
        # defined, so the kernel is an HBM->HBM identity copy.
        x = jnp.asarray(batch[self.input_key])
        return _identity_pallas(x)

    def compute_metrics(self, batch: Dict[str, Any], *args, **kwargs):
        """Compute the metrics"""
        return {}

    def sample(self, batch: Dict[str, Any], *args, **kwargs):
        """Sample from the model"""
        return {}


if __name__ == "__main__":
    key = jax.random.PRNGKey(0)
    # Small NCHW input consistent with an image model: (N=2, C=4, H=16, W=16).
    x = jax.random.normal(key, (2, 4, 16, 16), dtype=jnp.float32)

    model = BaseModel(ModelConfig(input_key="image"))
    batch = {"image": x}

    y = model.forward(batch)
    y = jax.block_until_ready(y)

    # Sanity: base model pass-through must be exact.
    assert y.shape == x.shape and y.dtype == x.dtype
    assert bool(jnp.all(y == x))
    assert model.compute_metrics(batch) == {}
    assert model.sample(batch) == {}

    print("KERNEL_OK")
</pallas_src>

<mosaic_0001>
module attributes {stable_mosaic.version = 11 : i64} {
  func.func @_single_dma_kernel(%arg0: memref<2x4x16x16xf32, #tpu.memory_space<any>>, %arg1: memref<2x4x16x16xf32, #tpu.memory_space<any>>, %arg2: memref<!tpu.dma_semaphore, #tpu.memory_space<semaphore_mem>>) attributes {dimension_semantics = [], scalar_prefetch = 0 : i64, scratch_operands = 1 : i64, tpu.core_type = #tpu.core_type<tc>} {
    tpu.enqueue_dma source(%arg0 : memref<2x4x16x16xf32, #tpu.memory_space<any>>) target(%arg1 : memref<2x4x16x16xf32, #tpu.memory_space<any>>) target_semaphore(%arg2 : memref<!tpu.dma_semaphore, #tpu.memory_space<semaphore_mem>>)
    tpu.wait_dma2 semaphore(%arg2 : memref<!tpu.dma_semaphore, #tpu.memory_space<semaphore_mem>>) src(%arg0 : memref<2x4x16x16xf32, #tpu.memory_space<any>>) dst(%arg1 : memref<2x4x16x16xf32, #tpu.memory_space<any>>)
    return
  }
}

</mosaic_0001>

<llo_original>
// kernel: _identity_pallas.1
$region0: #{_identity_pallas.1}
  #allocation0 [shape = 'u32[]', space=smem, size = 0x4, offset = 0x4, fixed_abs, tag = 'smem constant byte address 0x4 - core index']
  #allocation1 [shape = 'u32[144,128]{1,0:T(1,128)}', space=vmem, size = 0x12000, scoped, tag = 'internal scratch']
  #allocation2 [shape = 's32[1]{0}', space=sflag, size = 0x4, scoped, tag = 'scratch operand']
  #allocation3 [shape = 's32[]', space=sflag, size = 0x4, offset = 0, fixed_abs, tag = 'sflag constant byte address 0x0 - dummy sync flag']
  #allocation4 [shape = 'u32[0]{0}', space=smem, size = 0, offset = 0, fixed_abs, tag = 'smem constant byte address 0x0 - null']
  %s0 = inlined_call_operand.hbm [shape: f32[2,4,16,16], index: 0, kind: input, shape index: {}]
  %s1 = inlined_call_operand.hbm [shape: f32[2,4,16,16], index: 1, kind: output, shape index: {}]
  %s2 = sld [smem:[#allocation0]]
  $region2: #{_identity_pallas.1} parent=0
    _
  %s4 = ssub.s32 1, %s2
  %s5 = scalar_select 0, %s4, %s2
  %s7 = sshll.u32 1, 14
  %s8 = sxor.u32 4294967295, %s7
  %s11 = sshll.u32 3, 24
  %s12 = sxor.u32 4294967295, %s11
  %s13 = sand.u32 0, %s12
  %s15 = sor.u32 %s13, 0
  %18 = dma.general %s0, 2048, %s1, [#allocation2], [#allocation3], [#allocation4], %s15, 0
  %s19 = smul.u32 2, 4
  %s20 = smul.u32 %s19, 16
  %s21 = smul.u32 %s20, 1
  %s22 = sshll.u32 %s21, 4
  %23 = dma.done [#allocation2], %s22
  %24 = vsyncmov [#allocation2]
  %s25 = vpop.sfrf %24
  %p26 = scmp.eq.s32.totalorder %s25, 0
  %p27 = pneg %p26
  %29 = shalt.err (%p27)

</llo_original>
